<compile_context>
chip_gen: v6e
topology: v6e:2x2x1
jax: 0.10.0
libtpu: 0.0.40
codegen_flags: <defaults>
</compile_context>

<pallas_src>
import math
import functools

import jax
import jax.numpy as jnp
from jax.experimental import pallas as pl
from jax.experimental.pallas import tpu as pltpu


# ---------------------------------------------------------------------------
# chip-aware configuration
# ---------------------------------------------------------------------------

def _chip_config():
    """VMEM budget + matmul tile targets derived from the actual chip.

    v5e/v6e expose 128 MiB VMEM -> large (1024, 2048) matmul tiles put the big
    matmuls on the MXU roofline; v7x has 64 MiB per TensorCore where
    (512, 1024) tiles already reach the roofline (3.2 TB/s HBM) and bigger
    tiles would blow VMEM.
    """
    try:
        cap = int(pltpu.get_tpu_info().vmem_capacity_bytes)
    except Exception:                              # conservative fallback
        cap = 64 * 1024 * 1024
    budget = (cap * 3) // 4                        # headroom for Mosaic internals
    if cap >= 100 * 1024 * 1024:                   # v5e / v6e (128 MiB VMEM)
        tiles = (1024, 2048, 512)
    else:                                          # v7x (64 MiB per-TC VMEM)
        tiles = (512, 1024, 512)
    return budget, tiles


_VMEM_BUDGET, _MM_TILES = _chip_config()


def _pick_tile(dim, target, align):
    """Largest tile <= target that divides `dim` and is a multiple of `align`;
    falls back to the full dim (always legal for BlockSpec) if none exists."""
    if dim <= target:
        return dim
    t = (target // align) * align
    while t >= align:
        if dim % t == 0:
            return t
        t -= align
    return dim


def _compiler_params(semantics):
    return pltpu.CompilerParams(
        dimension_semantics=semantics,
        vmem_limit_bytes=_VMEM_BUDGET,
    )


def _erf(x):
    # Abramowitz & Stegun 7.1.26 (max abs error ~1.5e-7): exact-GELU support
    # built only from ops guaranteed to lower in Mosaic (exp + arithmetic).
    a1, a2, a3, a4, a5 = (0.254829592, -0.284496736, 1.421413741,
                          -1.453152027, 1.061405429)
    p = 0.3275911
    sign = jnp.where(x < 0.0, -1.0, 1.0)
    ax = jnp.abs(x)
    t = 1.0 / (1.0 + p * ax)
    poly = ((((a5 * t + a4) * t + a3) * t + a2) * t + a1) * t
    return sign * (1.0 - poly * jnp.exp(-ax * ax))


def _gelu_exact(x):
    return 0.5 * x * (1.0 + _erf(x * (1.0 / math.sqrt(2.0))))


# ---------------------------------------------------------------------------
# LayerNorm kernel (row tiled, f32 math)
# ---------------------------------------------------------------------------

def _layernorm_kernel(x_ref, g_ref, b_ref, o_ref, *, eps):
    x = x_ref[...].astype(jnp.float32)                       # (tm, H)
    mean = jnp.mean(x, axis=-1, keepdims=True)
    xc = x - mean
    var = jnp.mean(xc * xc, axis=-1, keepdims=True)
    inv = jax.lax.rsqrt(var + eps)
    y = xc * inv * g_ref[...].astype(jnp.float32) + b_ref[...].astype(jnp.float32)
    o_ref[...] = y.astype(o_ref.dtype)


def layernorm(x, gamma, beta, *, eps):
    M, H = x.shape
    # in + out double-buffered -> ~4 live (tm, H) blocks; keep them well under
    # the VMEM budget so the row tile also works at GPT-3 widths (H=12288).
    bytes_per_row = 4 * H * x.dtype.itemsize
    max_rows = max(8, (_VMEM_BUDGET // 3) // bytes_per_row)
    tm = _pick_tile(M, min(512, max_rows), 8)
    grid = (M // tm,)
    ce = pl.CostEstimate(
        flops=8 * M * H,
        transcendentals=M,
        bytes_accessed=(2 * M * H + 2 * H) * x.dtype.itemsize,
    )
    return pl.pallas_call(
        functools.partial(_layernorm_kernel, eps=eps),
        out_shape=jax.ShapeDtypeStruct((M, H), x.dtype),
        grid_spec=pltpu.PrefetchScalarGridSpec(
            num_scalar_prefetch=0,
            grid=grid,
            in_specs=[
                pl.BlockSpec((tm, H), lambda i: (i, 0)),
                pl.BlockSpec((1, H), lambda i: (0, 0)),
                pl.BlockSpec((1, H), lambda i: (0, 0)),
            ],
            out_specs=pl.BlockSpec((tm, H), lambda i: (i, 0)),
        ),
        compiler_params=_compiler_params(("parallel",)),
        cost_estimate=ce,
    )(x, gamma, beta)


# ---------------------------------------------------------------------------
# Tiled matmul + bias (+ optional exact gelu, + optional fused residual)
# ---------------------------------------------------------------------------

def _matmul_kernel(*refs, activation, has_residual):
    if has_residual:
        a_ref, w_ref, b_ref, r_ref, o_ref, acc_ref = refs
    else:
        a_ref, w_ref, b_ref, o_ref, acc_ref = refs
        r_ref = None

    @pl.when(pl.program_id(2) == 0)
    def _():
        acc_ref[...] = jnp.zeros_like(acc_ref)

    prec = jax.lax.Precision.HIGHEST if a_ref.dtype == jnp.float32 else None
    acc_ref[...] += jnp.dot(a_ref[...], w_ref[...],
                            preferred_element_type=jnp.float32,
                            precision=prec)

    @pl.when(pl.program_id(2) == pl.num_programs(2) - 1)
    def _():
        y = acc_ref[...] + b_ref[...].astype(jnp.float32)    # bias once per tile
        if activation == "gelu":
            y = _gelu_exact(y)                               # exact (erf) gelu
        if r_ref is not None:
            y = y + r_ref[...].astype(jnp.float32)           # fused residual add
        o_ref[...] = y.astype(o_ref.dtype)


def matmul_bias(a, w, b, residual=None, *, activation=None,
                tile_m=None, tile_n=None, tile_k=None, out_dtype=None):
    M, K = a.shape
    K2, N = w.shape
    assert K == K2
    out_dtype = out_dtype or a.dtype
    tm_t, tn_t, tk_t = _MM_TILES
    tm = _pick_tile(M, tile_m or tm_t, 8)
    tn = _pick_tile(N, tile_n or tn_t, 128)
    tk = _pick_tile(K, tile_k or tk_t, 128)
    grid = (M // tm, N // tn, K // tk)

    # Fail loudly (rather than compiling an over-sized block) if the fallback
    # "full dimension" tile would not fit the per-chip VMEM budget.
    itemsize = a.dtype.itemsize
    est = (2 * (tm * tk + tk * tn + tn + tm * tn
                + (tm * tn if residual is not None else 0)) * itemsize
           + tm * tn * 4)
    if est > _VMEM_BUDGET:
        raise ValueError(
            f"matmul tile ({tm},{tn},{tk}) needs ~{est >> 20} MiB VMEM "
            f"> budget {_VMEM_BUDGET >> 20} MiB; pass smaller tiles")

    in_specs = [
        pl.BlockSpec((tm, tk), lambda i, j, k: (i, k)),
        pl.BlockSpec((tk, tn), lambda i, j, k: (k, j)),
        pl.BlockSpec((1, tn), lambda i, j, k: (0, j)),
    ]
    operands = [a, w, b]
    if residual is not None:
        in_specs.append(pl.BlockSpec((tm, tn), lambda i, j, k: (i, j)))
        operands.append(residual)

    bytes_accessed = (M * K + K * N + N + M * N) * itemsize
    if residual is not None:
        bytes_accessed += M * N * itemsize
    ce = pl.CostEstimate(
        flops=2 * M * N * K,
        transcendentals=(M * N if activation == "gelu" else 0),
        bytes_accessed=bytes_accessed,
    )

    kernel = functools.partial(_matmul_kernel, activation=activation,
                               has_residual=residual is not None)
    return pl.pallas_call(
        kernel,
        out_shape=jax.ShapeDtypeStruct((M, N), out_dtype),
        grid_spec=pltpu.PrefetchScalarGridSpec(
            num_scalar_prefetch=0,
            grid=grid,
            in_specs=in_specs,
            out_specs=pl.BlockSpec((tm, tn), lambda i, j, k: (i, j)),
            scratch_shapes=[pltpu.VMEM((tm, tn), jnp.float32)],
        ),
        compiler_params=_compiler_params(("parallel", "parallel", "arbitrary")),
        cost_estimate=ce,
    )(*operands)


# ---------------------------------------------------------------------------
# Flash-style causal attention, reading heads out of the fused QKV projection
# ---------------------------------------------------------------------------

def _attention_kernel(q_ref, k_ref, v_ref, o_ref, m_ref, l_ref, acc_ref, *, scale):
    qi = pl.program_id(2)
    ki = pl.program_id(3)
    tq = q_ref.shape[1]
    tkv = k_ref.shape[1]

    @pl.when(ki == 0)
    def _():
        m_ref[...] = jnp.full_like(m_ref, -jnp.inf)
        l_ref[...] = jnp.zeros_like(l_ref)
        acc_ref[...] = jnp.zeros_like(acc_ref)

    q_start = qi * tq
    kv_start = ki * tkv

    # Only kv blocks at/below the causal diagonal do any work; blocks strictly
    # above it are also never DMA'd (their index_map is clamped).
    @pl.when(kv_start < q_start + tq)
    def _():
        q = q_ref[0] * scale                                  # fold 1/sqrt(hd) into q
        k = k_ref[0]
        v = v_ref[0]
        prec = jax.lax.Precision.HIGHEST if q_ref.dtype == jnp.float32 else None
        s = jax.lax.dot_general(q, k, (((1,), (1,)), ((), ())),
                                preferred_element_type=jnp.float32,
                                precision=prec)               # (tq, tkv)

        def update(scores):
            m_prev = m_ref[...]                               # (tq, 1)
            m_new = jnp.maximum(m_prev, jnp.max(scores, axis=-1, keepdims=True))
            alpha = jnp.exp(m_prev - m_new)
            p = jnp.exp(scores - m_new)
            l_ref[...] = alpha * l_ref[...] + jnp.sum(p, axis=-1, keepdims=True)
            acc_ref[...] = alpha * acc_ref[...] + jnp.dot(
                p.astype(v.dtype), v, preferred_element_type=jnp.float32,
                precision=prec)
            m_ref[...] = m_new

        on_diag = kv_start + tkv > q_start + 1                # straddles diagonal

        @pl.when(jnp.logical_not(on_diag))                    # fully visible fast path
        def _():
            update(s)

        @pl.when(on_diag)                                     # diagonal block: iota mask
        def _():
            row = q_start + jax.lax.broadcasted_iota(jnp.int32, (tq, tkv), 0)
            col = kv_start + jax.lax.broadcasted_iota(jnp.int32, (tq, tkv), 1)
            # 0/1 tril mask: s*mask - 10000*(1-mask) == where(col<=row, s, -1e4)
            update(jnp.where(col <= row, s, -10000.0))

    @pl.when(ki == pl.num_programs(3) - 1)
    def _():
        # exact division (epilogue only, once per q tile)
        o_ref[0] = (acc_ref[...] / l_ref[...]).astype(o_ref.dtype)


def causal_attention(qkv, *, num_heads, head_dim, tile_q=512, tile_kv=256):
    """qkv: (B, S, 3H) fused QKV projection output ([Q heads | K heads | V heads]).

    Returns the attention context in (B, S, H) layout (head h in columns
    [h*head_dim, (h+1)*head_dim)) -- exactly what PyTorch's
    permute(0,2,1,3).contiguous().view(..., H) produces, so no XLA transposes
    are needed before or after this kernel."""
    B, S, H3 = qkv.shape
    H = H3 // 3
    NH, HD = num_heads, head_dim
    assert NH * HD == H
    if HD % 128 != 0:
        # TODO(synk): head_dim not a multiple of 128 would need a head-transposed
        # layout path (GPT-3 uses head_dim=128, so this is the production case).
        raise ValueError("causal_attention requires head_dim % 128 == 0")

    tq = _pick_tile(S, tile_q, 8)
    tkv = _pick_tile(S, tile_kv, 8)
    grid = (B, NH, S // tq, S // tkv)
    scale = 1.0 / math.sqrt(HD)

    def q_map(b, h, qi, ki):
        return (b, qi, h)

    def last_visible(qi, ki):
        # kv blocks strictly above the causal diagonal re-use the last visible
        # block index -> Pallas issues no new DMA for them.
        return jnp.minimum(ki, ((qi + 1) * tq - 1) // tkv)

    def k_map(b, h, qi, ki):
        return (b, last_visible(qi, ki), NH + h)

    def v_map(b, h, qi, ki):
        return (b, last_visible(qi, ki), 2 * NH + h)

    itemsize = qkv.dtype.itemsize
    ce = pl.CostEstimate(
        flops=2 * B * NH * S * S * HD,                 # ~causal half of 4*S*S*HD
        transcendentals=(B * NH * S * S) // 2,
        bytes_accessed=(2 * B * S * H + B * NH * S * HD) * itemsize,
    )

    return pl.pallas_call(
        functools.partial(_attention_kernel, scale=scale),
        out_shape=jax.ShapeDtypeStruct((B, S, H), qkv.dtype),
        grid_spec=pltpu.PrefetchScalarGridSpec(
            num_scalar_prefetch=0,
            grid=grid,
            in_specs=[
                pl.BlockSpec((1, tq, HD), q_map),
                pl.BlockSpec((1, tkv, HD), k_map),
                pl.BlockSpec((1, tkv, HD), v_map),
            ],
            out_specs=pl.BlockSpec((1, tq, HD), q_map),
            scratch_shapes=[
                pltpu.VMEM((tq, 1), jnp.float32),      # running max
                pltpu.VMEM((tq, 1), jnp.float32),      # running denom
                pltpu.VMEM((tq, HD), jnp.float32),     # output accumulator
            ],
        ),
        compiler_params=_compiler_params(
            ("parallel", "parallel", "parallel", "arbitrary")),
        cost_estimate=ce,
    )(qkv, qkv, qkv)


# ---------------------------------------------------------------------------
# Full transformer layer
# ---------------------------------------------------------------------------

def prepare_params(params, compute_dtype=jnp.bfloat16):
    """One-time cast of the layer parameters to the MXU compute dtype.
    Weights are stored in x @ W layout (transposed from PyTorch Linear)."""
    cd = jnp.dtype(compute_dtype)
    return {k: jnp.asarray(v).astype(cd) for k, v in params.items()}


def gpt3_transformer_layer(x, ltor_mask, params, *, num_heads, eps=1e-5):
    """x: (B, S, H); ltor_mask: (S, S) causal 0/1 mask.  Eval-mode forward."""
    # TODO(synk): ltor_mask is assumed to be the standard lower-triangular causal
    # mask (regenerated from iota inside the attention kernel); arbitrary masks
    # would need to be DMA'd into the kernel tile-by-tile instead.
    del ltor_mask
    B, S, H = x.shape
    hd = H // num_heads
    orig_dtype = x.dtype
    cd = params["wqkv"].dtype

    x2 = x.astype(cd).reshape(B * S, H)

    # input layernorm
    ln1 = layernorm(x2, params["ln1_g"], params["ln1_b"], eps=eps)

    # Fused QKV projection: single (B*S, H) x (H, 3H) matmul -> ln1 read once.
    qkv = matmul_bias(ln1, params["wqkv"], params["bqkv"])

    # Attention reads Q/K/V heads straight out of the fused (B, S, 3H) result
    # via BlockSpec column offsets and writes (B, S, H): no head transposes.
    ctx = causal_attention(qkv.reshape(B, S, 3 * H),
                           num_heads=num_heads, head_dim=hd)
    ctx = ctx.reshape(B * S, H)                       # free reshape

    # attention output projection + first residual (dropouts = identity)
    resid1 = matmul_bias(ctx, params["wd"], params["bd"], residual=x2)

    # post-attention layernorm, MLP (exact gelu), second residual
    ln2 = layernorm(resid1, params["ln2_g"], params["ln2_b"], eps=eps)
    h1 = matmul_bias(ln2, params["w1"], params["b1"], activation="gelu")
    out = matmul_bias(h1, params["w2"], params["b2"], residual=resid1)

    return out.reshape(B, S, H).astype(orig_dtype)


# ---------------------------------------------------------------------------
# Pure-JAX reference of the PyTorch forward (eval mode)
# ---------------------------------------------------------------------------

def reference_layer(x, mask, params, *, num_heads, eps=1e-5):
    B, S, H = x.shape
    hd = H // num_heads

    def ln(v, g, b):
        m = v.mean(-1, keepdims=True)
        var = ((v - m) ** 2).mean(-1, keepdims=True)
        return (v - m) / jnp.sqrt(var + eps) * g + b

    ln1 = ln(x, params["ln1_g"], params["ln1_b"])
    qkv = ln1 @ params["wqkv"] + params["bqkv"]
    q, k, v = jnp.split(qkv, 3, axis=-1)

    def heads(t):
        return t.reshape(B, S, num_heads, hd).transpose(0, 2, 1, 3)

    qh, kh, vh = heads(q), heads(k), heads(v)
    scores = jnp.einsum("bnqd,bnkd->bnqk", qh, kh) / math.sqrt(hd)
    m4 = mask.reshape(1, 1, S, S)
    scores = scores * m4 - 10000.0 * (1.0 - m4)
    probs = jax.nn.softmax(scores, axis=-1)
    ctx = jnp.einsum("bnqk,bnkd->bnqd", probs, vh).transpose(0, 2, 1, 3).reshape(B, S, H)
    attn = ctx @ params["wd"] + params["bd"]
    resid1 = x + attn
    ln2 = ln(resid1, params["ln2_g"], params["ln2_b"])
    h1 = jax.nn.gelu(ln2 @ params["w1"] + params["b1"], approximate=False)
    mlp = h1 @ params["w2"] + params["b2"]
    return resid1 + mlp


if __name__ == "__main__":
    # head_dim = 128 to match GPT-3's per-head width (required by the fused-QKV
    # attention layout); everything else kept small.
    B, S, H, NH = 2, 8, 256, 2
    key = jax.random.PRNGKey(0)
    ks = jax.random.split(key, 16)

    def rnd(k, shape, scale=0.05):
        return (scale * jax.random.normal(k, shape)).astype(jnp.float32)

    params = {
        "ln1_g": jnp.ones((1, H), jnp.float32) + rnd(ks[0], (1, H)),
        "ln1_b": rnd(ks[1], (1, H)),
        "wqkv": rnd(ks[2], (H, 3 * H)),
        "bqkv": rnd(ks[3], (1, 3 * H)),
        "wd": rnd(ks[4], (H, H)),
        "bd": rnd(ks[5], (1, H)),
        "ln2_g": jnp.ones((1, H), jnp.float32) + rnd(ks[6], (1, H)),
        "ln2_b": rnd(ks[7], (1, H)),
        "w1": rnd(ks[8], (H, 4 * H)),
        "b1": rnd(ks[9], (1, 4 * H)),
        "w2": rnd(ks[10], (4 * H, H)),
        "b2": rnd(ks[11], (1, H)),
    }

    x = jax.random.normal(ks[12], (B, S, H), jnp.float32)
    mask = jnp.tril(jnp.ones((S, S), jnp.float32))   # ltor causal mask

    ref = reference_layer(x, mask, params, num_heads=NH)

    # f32 path (exact-precision MXU) -- tight check
    p32 = prepare_params(params, jnp.float32)
    out32 = jax.block_until_ready(gpt3_transformer_layer(x, mask, p32, num_heads=NH))
    assert out32.shape == (B, S, H)
    err32 = float(jnp.max(jnp.abs(out32 - ref)))
    assert err32 < 5e-3, f"f32 path error too large: {err32}"

    # bf16 MXU operands, f32 accumulation -- loose check
    pbf16 = prepare_params(params, jnp.bfloat16)
    outbf = jax.block_until_ready(gpt3_transformer_layer(x, mask, pbf16, num_heads=NH))
    errbf = float(jnp.max(jnp.abs(outbf - ref)))
    assert errbf < 0.3, f"bf16 path error too large: {errbf}"

    # TODO(synk): dropout layers are eval-mode identities; training-mode dropout
    # and the is_infer (rectangular-mask) branch are not implemented.
    print("KERNEL_OK")
</pallas_src>

<mosaic_0001>
module attributes {stable_mosaic.version = 11 : i64} {
  func.func @_layernorm_kernel(%arg0: i32, %arg1: memref<16x256xf32, #tpu.memory_space<vmem>>, %arg2: memref<1x256xf32, #tpu.memory_space<vmem>>, %arg3: memref<1x256xf32, #tpu.memory_space<vmem>>, %arg4: memref<16x256xf32, #tpu.memory_space<vmem>>) attributes {dimension_semantics = [#tpu.dimension_semantics<parallel>], iteration_bounds = array<i64: 1>, scalar_prefetch = 0 : i64, scratch_operands = 0 : i64, tpu.core_type = #tpu.core_type<tc>, window_params = [{transform_indices = @transform_0, window_bounds = array<i64: 16, 256>}, {pipeline_mode = #tpu.pipeline_mode<synchronous>, transform_indices = @transform_1, window_bounds = array<i64: 1, 256>}, {pipeline_mode = #tpu.pipeline_mode<synchronous>, transform_indices = @transform_2, window_bounds = array<i64: 1, 256>}, {transform_indices = @transform_3, window_bounds = array<i64: 16, 256>}]} {
    %c0 = arith.constant 0 : index
    %c0_0 = arith.constant 0 : index
    %0 = vector.load %arg1[%c0, %c0_0] : memref<16x256xf32, #tpu.memory_space<vmem>>, vector<16x256xf32>
    %cst = arith.constant dense<0.000000e+00> : vector<16xf32>
    %1 = vector.multi_reduction <add>, %0, %cst [1] : vector<16x256xf32> to vector<16xf32>
    %2 = vector.shape_cast %1 : vector<16xf32> to vector<16x1xf32>
    %cst_1 = arith.constant 2.560000e+02 : f32
    %3 = vector.broadcast %cst_1 : f32 to vector<16x1xf32>
    %4 = arith.divf %2, %3 : vector<16x1xf32>
    %5 = vector.broadcast %4 : vector<16x1xf32> to vector<16x256xf32>
    %6 = arith.subf %0, %5 : vector<16x256xf32>
    %7 = arith.mulf %6, %6 : vector<16x256xf32>
    %cst_2 = arith.constant dense<0.000000e+00> : vector<16xf32>
    %8 = vector.multi_reduction <add>, %7, %cst_2 [1] : vector<16x256xf32> to vector<16xf32>
    %9 = vector.shape_cast %8 : vector<16xf32> to vector<16x1xf32>
    %cst_3 = arith.constant 2.560000e+02 : f32
    %10 = vector.broadcast %cst_3 : f32 to vector<16x1xf32>
    %11 = arith.divf %9, %10 : vector<16x1xf32>
    %cst_4 = arith.constant 9.99999974E-6 : f32
    %12 = vector.broadcast %cst_4 : f32 to vector<16x1xf32>
    %13 = arith.addf %11, %12 : vector<16x1xf32>
    %14 = math.rsqrt %13 : vector<16x1xf32>
    %15 = vector.broadcast %14 : vector<16x1xf32> to vector<16x256xf32>
    %16 = arith.mulf %6, %15 : vector<16x256xf32>
    %c0_5 = arith.constant 0 : index
    %c0_6 = arith.constant 0 : index
    %17 = vector.load %arg2[%c0_5, %c0_6] : memref<1x256xf32, #tpu.memory_space<vmem>>, vector<1x256xf32>
    %18 = vector.broadcast %17 : vector<1x256xf32> to vector<16x256xf32>
    %19 = arith.mulf %16, %18 : vector<16x256xf32>
    %c0_7 = arith.constant 0 : index
    %c0_8 = arith.constant 0 : index
    %20 = vector.load %arg3[%c0_7, %c0_8] : memref<1x256xf32, #tpu.memory_space<vmem>>, vector<1x256xf32>
    %21 = vector.broadcast %20 : vector<1x256xf32> to vector<16x256xf32>
    %22 = arith.addf %19, %21 : vector<16x256xf32>
    %c0_9 = arith.constant 0 : index
    %c0_10 = arith.constant 0 : index
    %23 = vector.load %arg4[%c0_9, %c0_10] : memref<16x256xf32, #tpu.memory_space<vmem>>, vector<16x256xf32>
    tpu.vector_store %arg4[%c0_9, %c0_10], %22 {strides = array<i32>} : memref<16x256xf32, #tpu.memory_space<vmem>>, vector<16x256xf32>,
    return
  }
  func.func @transform_0(%arg0: i32) -> (i32, i32) {
    %c0_i32 = arith.constant 0 : i32
    %c0_i32_0 = arith.constant 0 : i32
    return %arg0, %c0_i32 : i32, i32
  }
  func.func @transform_1(%arg0: i32) -> (i32, i32) {
    %c0_i32 = arith.constant 0 : i32
    %c0_i32_0 = arith.constant 0 : i32
    %c0_i32_1 = arith.constant 0 : i32
    return %c0_i32, %c0_i32_0 : i32, i32
  }
  func.func @transform_2(%arg0: i32) -> (i32, i32) {
    %c0_i32 = arith.constant 0 : i32
    %c0_i32_0 = arith.constant 0 : i32
    %c0_i32_1 = arith.constant 0 : i32
    return %c0_i32, %c0_i32_0 : i32, i32
  }
  func.func @transform_3(%arg0: i32) -> (i32, i32) {
    %c0_i32 = arith.constant 0 : i32
    %c0_i32_0 = arith.constant 0 : i32
    return %arg0, %c0_i32 : i32, i32
  }
}

</mosaic_0001>

<llo_original>
// kernel: tpu_custom_call.1
$region0: #{tpu_custom_call.1}
  #allocation0 [shape = 'u32[]', space=smem, size = 0x4, offset = 0x4, fixed_abs, tag = 'smem constant byte address 0x4 - core index']
  #allocation1 [shape = 'u32[144,128]{1,0:T(1,128)}', space=vmem, size = 0x12000, scoped, tag = 'internal scratch']
  %s0 = inlined_call_operand.hbm [shape: f32[16,256], index: 0, kind: input, shape index: {}]
  %s1 = inlined_call_operand.hbm [shape: f32[1,256], index: 1, kind: input, shape index: {}]
  %s2 = inlined_call_operand.vmem [shape: f32[1,256], index: 2, kind: input, shape index: {}]
  %s3 = inlined_call_operand.hbm [shape: f32[16,256], index: 3, kind: output, shape index: {}]
  %s4 = sld [smem:[#allocation0]]
  $region30: #{tpu_custom_call.1} parent=0
    _
  %s6 = ssub.s32 1, %s4
  %s7 = scalar_select 0, %s6, %s4
  $region1: #{tpu_custom_call.1} parent=0
    #allocation2 [shape = 'u8[16384]{0}', space=vmem, size = 0x4000, scoped, tag = 'input window, operand 0, single buffered']
    #allocation3 [shape = 's32[1]{0}', space=sflag, size = 0x4, scoped, tag = 'scoped memory for tpu_custom_call.1']
    #allocation4 [shape = 's32[1]{0}', space=sflag, size = 0x4, scoped, tag = 'scoped memory for tpu_custom_call.1']
    #allocation5 [shape = 'u8[1024]{0}', space=vmem, size = 0x400, scoped, tag = 'input window, operand 1, single buffered']
    #allocation6 [shape = 's32[1]{0}', space=sflag, size = 0x4, scoped, tag = 'scoped memory for tpu_custom_call.1']
    #allocation7 [shape = 'u8[16384]{0}', space=vmem, size = 0x4000, scoped, tag = 'output window, operand 0, single buffered']
    %8 = vsyncpa [#allocation3], 0
    %9 = vsyncpa [#allocation6], 0
    %10 = vsyncpa [#allocation4], 0
    // Predicated region
    $region2: #{tpu_custom_call.1} parent=1 // pred_check
      _
    $region3: #{tpu_custom_call.1} parent=1 // pred_check_branch
      %12 = sbr.rel (0) target = $region5
    $region4: #{tpu_custom_call.1} parent=1 // pred_region
      %s14 = ssub.s32 512, 512
      %15 = vsyncadd [#allocation3], %s14
      %s16 = sshll.u32 [#allocation2], 4
      %s17 = int_to_ptr.vmem [resolvable:$true] %s16
      %22 = dma.hbm_to_vmem [thread:$0]  %s0, 512, %s17, [#allocation3], 256, 256, 16
    $region5: #{tpu_custom_call.1} parent=1 // pred_fallthru
      _
    // Predicated region
    $region6: #{tpu_custom_call.1} parent=1 // pred_check
      _
    $region7: #{tpu_custom_call.1} parent=1 // pred_check_branch
      %24 = sbr.rel (0) target = $region9
    $region8: #{tpu_custom_call.1} parent=1 // pred_region
      %s26 = ssub.s32 32, 32
      %27 = vsyncadd [#allocation6], %s26
      %s29 = sshll.u32 [#allocation5], 4
      %s30 = int_to_ptr.vmem [resolvable:$true] %s29
      %32 = dma.hbm_to_vmem [thread:$0]  %s1, 32, %s30, [#allocation6]
    $region9: #{tpu_custom_call.1} parent=1 // pred_fallthru
      _
    // Predicated region
    $region10: #{tpu_custom_call.1} parent=1 // pred_check
      _
    $region11: #{tpu_custom_call.1} parent=1 // pred_check_branch
      %34 = sbr.rel (0) target = $region13
    $region12: #{tpu_custom_call.1} parent=1 // pred_region
      _
    $region13: #{tpu_custom_call.1} parent=1 // pred_fallthru
      _
    // Predicated region
    $region14: #{tpu_custom_call.1} parent=1 // pred_check
      _
    $region15: #{tpu_custom_call.1} parent=1 // pred_check_branch
      %36 = sbr.rel (0) target = $region17
    $region16: #{tpu_custom_call.1} parent=1 // pred_region
      %37 = dma.done [#allocation3], 512
    $region17: #{tpu_custom_call.1} parent=1 // pred_fallthru
      _
    // Predicated region
    $region18: #{tpu_custom_call.1} parent=1 // pred_check
      _
    $region19: #{tpu_custom_call.1} parent=1 // pred_check_branch
      %39 = sbr.rel (0) target = $region21
    $region20: #{tpu_custom_call.1} parent=1 // pred_region
      %40 = dma.done [#allocation6], 32
    $region21: #{tpu_custom_call.1} parent=1 // pred_fallthru
      _
    %v41 = vld [vmem:[#allocation2] sm:$0xff]
    %v42 = vld [vmem:[#allocation2 + $0x8] sm:$0xff]
    %v43 = vld [vmem:[#allocation2 + $0x10] sm:$0xff]
    %v44 = vld [vmem:[#allocation2 + $0x18] sm:$0xff]
    %v45 = vadd.f32 %v41, %v42
    %46 = vadd.xlane.f32.xlu0 %v45
    %v47 = vpop.xlane.xlu0 %46
    %v48 = vadd.f32 %v43, %v44
    %49 = vadd.xlane.f32.xlu0 %v48
    %v50 = vpop.xlane.xlu0 %49
    %v51 = vrcp.pop 256.0
    %v52 = vmul.f32 %v47, %v51
    %v53 = vmul.f32 %v50, %v51
    %v54 = vsub.f32 %v41, %v52
    %v55 = vsub.f32 %v42, %v52
    %v56 = vsub.f32 %v43, %v53
    %v57 = vsub.f32 %v44, %v53
    %v58 = vmul.f32 %v54, %v54
    %v59 = vmul.f32 %v55, %v55
    %v60 = vmul.f32 %v56, %v56
    %v61 = vmul.f32 %v57, %v57
    %v62 = vadd.f32 %v58, %v59
    %63 = vadd.xlane.f32.xlu0 %v62
    %v64 = vpop.xlane.xlu0 %63
    %v65 = vadd.f32 %v60, %v61
    %66 = vadd.xlane.f32.xlu0 %v65
    %v67 = vpop.xlane.xlu0 %66
    %v68 = vmul.f32 %v64, %v51
    %v69 = vmul.f32 %v67, %v51
    %v70 = vadd.f32 %v68, 1e-05
    %v71 = vadd.f32 %v69, 1e-05
    %v72 = vrsqrt.pop %v70
    %v73 = vrsqrt.pop %v71
    %v74 = vmul.f32 %v54, %v72
    %v75 = vmul.f32 %v55, %v72
    %v76 = vmul.f32 %v56, %v73
    %v77 = vmul.f32 %v57, %v73
    %v78 = vld [vmem:[#allocation5] sm:$0x3]
    %v80 = vlaneseq
    %v81 = vshrl.u32 %v80, 7
    %v82 = vsub.s32 0, %v81
    %v83 = vrot.slane %v78, %v82
    %v84 = vlaneseq
    %v85 = vshrl.u32 %v84, 7
    %v86 = vsub.s32 1, %v85
    %v87 = vrot.slane %v78, %v86
    %v90 = vmul.f32 %v74, %v83
    %v91 = vmul.f32 %v75, %v87
    %v92 = vmul.f32 %v76, %v83
    %v93 = vmul.f32 %v77, %v87
    %v94 = vld [vmem:[%s2] sm:$0x3]
    %v96 = vlaneseq
    %v97 = vshrl.u32 %v96, 7
    %v98 = vsub.s32 0, %v97
    %v99 = vrot.slane %v94, %v98
    %v100 = vlaneseq
    %v101 = vshrl.u32 %v100, 7
    %v102 = vsub.s32 1, %v101
    %v103 = vrot.slane %v94, %v102
    %v106 = vadd.f32 %v90, %v99
    %v107 = vadd.f32 %v91, %v103
    %v108 = vadd.f32 %v92, %v99
    %v109 = vadd.f32 %v93, %v103
    %110 = vst [vmem:[#allocation7] sm:$0xff] %v106
    %111 = vst [vmem:[#allocation7 + $0x8] sm:$0xff] %v107
    %112 = vst [vmem:[#allocation7 + $0x10] sm:$0xff] %v108
    %113 = vst [vmem:[#allocation7 + $0x18] sm:$0xff] %v109
    // Predicated region
    $region22: #{tpu_custom_call.1} parent=1 // pred_check
      _
    $region23: #{tpu_custom_call.1} parent=1 // pred_check_branch
      %115 = sbr.rel (0) target = $region25
    $region24: #{tpu_custom_call.1} parent=1 // pred_region
      %s117 = ssub.s32 512, 512
      %118 = vsyncadd [#allocation4], %s117
      %s119 = sshll.u32 [#allocation7], 4
      %s120 = int_to_ptr.vmem [resolvable:$true] %s119
      %125 = dma.vmem_to_hbm [thread:$0]  %s120, 512, %s3, [#allocation4], 256, 256, 16
    $region25: #{tpu_custom_call.1} parent=1 // pred_fallthru
      _
    // Predicated region
    $region26: #{tpu_custom_call.1} parent=1 // pred_check
      _
    $region27: #{tpu_custom_call.1} parent=1 // pred_check_branch
      %127 = sbr.rel (0) target = $region29
    $region28: #{tpu_custom_call.1} parent=1 // pred_region
      %128 = dma.done [#allocation4], 512
    $region29: #{tpu_custom_call.1} parent=1 // pred_fallthru
      _
    %129 = vsyncpa [#allocation3], 1
    %130 = vsyncpa [#allocation6], 1
    %131 = vsyncpa [#allocation4], 1

</llo_original>
